<compile_context>
chip_gen: v6e
topology: v6e:2x2x1
jax: 0.10.0
libtpu: 0.0.40
codegen_flags: <defaults>
</compile_context>

<pallas_src>
import functools

import jax
import jax.numpy as jnp
from jax.experimental import pallas as pl
from jax.experimental.pallas import tpu as pltpu


def _ensemble_kernel(x_ref, w1_ref, w2_ref, b_ref, o_ref, *, f_total, f_pad):
    """Whole ensemble in one shot (no grid).

    x_ref : (B, D1+D2)         shared inputs of both branches, concatenated
    w1_ref: (D1+D2, F)         block-diagonal fused first-layer weights
    w2_ref: (F, NT)            block-diagonal per-model head columns
    b_ref : (1, f_pad + NT)    hidden biases in [0, F), head biases at [f_pad, ·)
    o_ref : (B, NT)            final ensemble output (== torch.concat(dim=1))
    """
    # Static, lane-aligned slices of the packed bias slab (f32).
    b1 = b_ref[:, :f_total]          # (1, F)
    b2 = b_ref[:, f_pad:]            # (1, NT)

    # One wide MXU matmul covers every sub-model's hidden layer.
    x = x_ref[...].astype(w1_ref.dtype)
    h = jnp.dot(x, w1_ref[...], preferred_element_type=jnp.float32) + b1
    h = jnp.maximum(h, 0.0)                                   # (B, F), f32

    # One block-diagonal head matmul finishes all models' scores at once.
    s = jnp.dot(h.astype(w2_ref.dtype), w2_ref[...],
                preferred_element_type=jnp.float32) + b2      # (B, NT), f32

    o_ref[...] = jax.nn.sigmoid(s).astype(o_ref.dtype)


def fuse_ensemble_params(params1, params2, compute_dtype=jnp.float32):
    """One-time prep: fuse per-model parameter stacks into MXU-friendly slabs.

    params*: (w1 (n, D, H), b1 (n, H), w2 (n, H, 1), b2 (n, 1))
    Returns ((w1_fused, w2_fused, bias_slab), meta).
    """
    w1_1, b1_1, w2_1, b2_1 = params1
    w1_2, b1_2, w2_2, b2_2 = params2
    n1, d1, h1 = w1_1.shape
    n2, d2, h2 = w1_2.shape
    f1, f2 = n1 * h1, n2 * h2
    f_total = f1 + f2
    nt = n1 + n2
    # Head biases live at a lane-aligned (multiple of 128) offset so both
    # in-kernel static slices start at aligned lanes.
    f_pad = ((f_total + 127) // 128) * 128

    # Block-diagonal fused first layer: (D1+D2, F).  Model m of branch 1 owns
    # hidden columns [m*H1, (m+1)*H1); branch 2 models follow after f1.
    w1 = jnp.zeros((d1 + d2, f_total), jnp.float32)
    w1 = w1.at[:d1, :f1].set(jnp.transpose(w1_1, (1, 0, 2)).reshape(d1, f1))
    w1 = w1.at[d1:, f1:].set(jnp.transpose(w1_2, (1, 0, 2)).reshape(d2, f2))

    # Block-diagonal heads: (F, NT); built with einsum (no per-model scatter loop).
    blk1 = jnp.einsum('nh,nm->nhm', w2_1[:, :, 0],
                      jnp.eye(n1, dtype=jnp.float32)).reshape(f1, n1)
    blk2 = jnp.einsum('nh,nm->nhm', w2_2[:, :, 0],
                      jnp.eye(n2, dtype=jnp.float32)).reshape(f2, n2)
    w2 = jnp.zeros((f_total, nt), jnp.float32)
    w2 = w2.at[:f1, :n1].set(blk1)
    w2 = w2.at[f1:, n1:].set(blk2)

    # Packed bias slab (always f32: elementwise math stays f32, v5e-safe).
    bias = jnp.zeros((1, f_pad + nt), jnp.float32)
    bias = bias.at[0, :f1].set(b1_1.reshape(-1))
    bias = bias.at[0, f1:f_total].set(b1_2.reshape(-1))
    bias = bias.at[0, f_pad:].set(
        jnp.concatenate([b2_1.reshape(-1), b2_2.reshape(-1)]))

    meta = dict(d1=d1, d2=d2, f_total=f_total, f_pad=f_pad, nt=nt)
    return (w1.astype(compute_dtype), w2.astype(compute_dtype), bias), meta


def ensemble_forward(model1_dat, model2_dat, fused_params, meta):
    """Pallas equivalent of Ensemble.forward.

    model1_dat / model2_dat: lists holding the (single) input tensor of each
    branch, shapes (B, D1) / (B, D2).
    Returns (B, n_model1 + n_model2), matching torch.concat(..., dim=1).
    """
    (x1,) = model1_dat
    (x2,) = model2_dat
    w1, w2, bias = fused_params
    # Branch inputs feed a block-diagonal W1, so a single concatenated input
    # suffices.  (Production callers can pass it pre-concatenated.)
    x = jnp.concatenate([x1.astype(jnp.float32), x2.astype(jnp.float32)], axis=1)
    b = x.shape[0]

    kernel = functools.partial(_ensemble_kernel,
                               f_total=meta['f_total'], f_pad=meta['f_pad'])
    vmem = pl.BlockSpec(memory_space=pltpu.MemorySpace.VMEM)

    # Grid-less call: every operand is a full-array VMEM block (a few tens of
    # KiB total, far below scoped-VMEM limits on v5e/v6e/v7x).
    out = pl.pallas_call(
        kernel,
        out_shape=jax.ShapeDtypeStruct((b, meta['nt']), jnp.float32),
        in_specs=[vmem, vmem, vmem, vmem],
        out_specs=vmem,
    )(x, w1, w2, bias)
    return out


def _init_branch_params(key, n_models, d_in, hidden):
    k1, k2, k3, k4 = jax.random.split(key, 4)
    w1 = 0.1 * jax.random.normal(k1, (n_models, d_in, hidden), jnp.float32)
    b1 = 0.1 * jax.random.normal(k2, (n_models, hidden), jnp.float32)
    w2 = 0.1 * jax.random.normal(k3, (n_models, hidden, 1), jnp.float32)
    b2 = 0.1 * jax.random.normal(k4, (n_models, 1), jnp.float32)
    return w1, b1, w2, b2


def _reference_forward(model1_dat, model2_dat, params1, params2):
    """Pure-JAX reference with the original per-model-loop semantics."""
    def branch(x, w1, b1, w2, b2):
        cols = []
        for m in range(w1.shape[0]):
            h = jnp.maximum(x @ w1[m] + b1[m][None, :], 0.0)
            cols.append(jax.nn.sigmoid(h @ w2[m] + b2[m][None, :]))  # (B, 1)
        return jnp.concatenate(cols, axis=1)
    o1 = branch(model1_dat[0], *params1)
    o2 = branch(model2_dat[0], *params2)
    return jnp.concatenate([o1, o2], axis=1)


if __name__ == "__main__":
    key = jax.random.PRNGKey(0)
    k_x1, k_x2, k_p1, k_p2 = jax.random.split(key, 4)

    B = 8            # batch
    D1, D2 = 32, 24  # input feature dims of the two branch model families
    H = 32           # hidden width of each synthetic sub-model
    N1, N2 = 3, 2    # number of Model1 / Model2 ensemble members

    x1 = jax.random.normal(k_x1, (B, D1), jnp.float32)
    x2 = jax.random.normal(k_x2, (B, D2), jnp.float32)

    params1 = _init_branch_params(k_p1, N1, D1, H)
    params2 = _init_branch_params(k_p2, N2, D2, H)
    ref = _reference_forward([x1], [x2], params1, params2)

    # --- f32 path (exact) ---------------------------------------------------
    fused_f32, meta = fuse_ensemble_params(params1, params2, jnp.float32)
    out = jax.block_until_ready(ensemble_forward([x1], [x2], fused_f32, meta))
    assert out.shape == (B, N1 + N2), out.shape
    assert jnp.allclose(out, ref, atol=1e-4, rtol=1e-4), (
        float(jnp.max(jnp.abs(out - ref))))

    # --- bf16-operand path (v6e/v7x MXU-native; elementwise math stays f32) --
    fused_bf16, meta_bf = fuse_ensemble_params(params1, params2, jnp.bfloat16)
    out_bf = jax.block_until_ready(
        ensemble_forward([x1], [x2], fused_bf16, meta_bf))
    assert out_bf.shape == (B, N1 + N2), out_bf.shape
    assert jnp.allclose(out_bf, ref, atol=3e-2, rtol=3e-2), (
        float(jnp.max(jnp.abs(out_bf - ref))))

    print("KERNEL_OK")
</pallas_src>

<mosaic_0001>
module attributes {stable_mosaic.version = 11 : i64} {
  func.func @_ensemble_kernel(%arg0: memref<8x56xf32, #tpu.memory_space<vmem>>, %arg1: memref<56x160xf32, #tpu.memory_space<vmem>>, %arg2: memref<160x5xf32, #tpu.memory_space<vmem>>, %arg3: memref<1x261xf32, #tpu.memory_space<vmem>>, %arg4: memref<8x5xf32, #tpu.memory_space<vmem>>) attributes {dimension_semantics = [], scalar_prefetch = 0 : i64, scratch_operands = 0 : i64, tpu.core_type = #tpu.core_type<tc>} {
    %c0 = arith.constant 0 : index
    %c0_0 = arith.constant 0 : index
    %0 = vector.load %arg3[%c0, %c0_0] : memref<1x261xf32, #tpu.memory_space<vmem>>, vector<1x160xf32>
    %c0_1 = arith.constant 0 : index
    %c256 = arith.constant 256 : index
    %1 = vector.load %arg3[%c0_1, %c256] : memref<1x261xf32, #tpu.memory_space<vmem>>, vector<1x5xf32>
    %c0_2 = arith.constant 0 : index
    %c0_3 = arith.constant 0 : index
    %2 = vector.load %arg0[%c0_2, %c0_3] : memref<8x56xf32, #tpu.memory_space<vmem>>, vector<8x56xf32>
    %c0_4 = arith.constant 0 : index
    %c0_5 = arith.constant 0 : index
    %3 = vector.load %arg1[%c0_4, %c0_5] : memref<56x160xf32, #tpu.memory_space<vmem>>, vector<56x160xf32>
    %cst = arith.constant dense<0.000000e+00> : vector<8x160xf32>
    %4 = tpu.matmul %2, %3, %cst {dimension_numbers = #tpu.dot_dimension_numbers<[1], [0], [0], [1], [0, 0, 1, 1], [], []>} : vector<8x56xf32>, vector<56x160xf32>, vector<8x160xf32> -> vector<8x160xf32>
    %5 = vector.broadcast %0 : vector<1x160xf32> to vector<8x160xf32>
    %6 = arith.addf %4, %5 : vector<8x160xf32>
    %cst_6 = arith.constant 0.000000e+00 : f32
    %7 = vector.broadcast %cst_6 : f32 to vector<8x160xf32>
    %8 = arith.maximumf %6, %7 : vector<8x160xf32>
    %c0_7 = arith.constant 0 : index
    %c0_8 = arith.constant 0 : index
    %9 = vector.load %arg2[%c0_7, %c0_8] : memref<160x5xf32, #tpu.memory_space<vmem>>, vector<160x5xf32>
    %cst_9 = arith.constant dense<0.000000e+00> : vector<8x5xf32>
    %10 = tpu.matmul %8, %9, %cst_9 {dimension_numbers = #tpu.dot_dimension_numbers<[1], [0], [0], [1], [0, 0, 1, 1], [], []>} : vector<8x160xf32>, vector<160x5xf32>, vector<8x5xf32> -> vector<8x5xf32>
    %11 = vector.broadcast %1 : vector<1x5xf32> to vector<8x5xf32>
    %12 = arith.addf %10, %11 : vector<8x5xf32>
    %13 = arith.negf %12 : vector<8x5xf32>
    %14 = math.exp %13 : vector<8x5xf32>
    %cst_10 = arith.constant 1.000000e+00 : f32
    %15 = vector.broadcast %cst_10 : f32 to vector<8x5xf32>
    %16 = arith.addf %15, %14 : vector<8x5xf32>
    %17 = arith.divf %15, %16 : vector<8x5xf32>
    %c0_11 = arith.constant 0 : index
    %c0_12 = arith.constant 0 : index
    %18 = vector.load %arg4[%c0_11, %c0_12] : memref<8x5xf32, #tpu.memory_space<vmem>>, vector<8x5xf32>
    tpu.vector_store %arg4[%c0_11, %c0_12], %17 {strides = array<i32>} : memref<8x5xf32, #tpu.memory_space<vmem>>, vector<8x5xf32>,
    return
  }
}

</mosaic_0001>

<llo_original>
// kernel: tpu_custom_call.1
$region0: #{tpu_custom_call.1}
  #allocation0 [shape = 'u32[]', space=smem, size = 0x4, offset = 0x4, fixed_abs, tag = 'smem constant byte address 0x4 - core index']
  #allocation1 [shape = 'u32[144,128]{1,0:T(1,128)}', space=vmem, size = 0x12000, scoped, tag = 'internal scratch']
  %s0 = inlined_call_operand.vmem [shape: f32[8,56], index: 0, kind: input, shape index: {}]
  %s1 = inlined_call_operand.vmem [shape: f32[56,160], index: 1, kind: input, shape index: {}]
  %s2 = inlined_call_operand.vmem [shape: f32[160,5], index: 2, kind: input, shape index: {}]
  %s3 = inlined_call_operand.vmem [shape: f32[1,261], index: 3, kind: input, shape index: {}]
  %s4 = inlined_call_operand.hbm [shape: f32[8,5], index: 4, kind: output, shape index: {}]
  %s5 = sld [smem:[#allocation0]]
  $region26: #{tpu_custom_call.1} parent=0
    _
  %s7 = ssub.s32 1, %s5
  %s8 = scalar_select 0, %s7, %s5
  $region1: #{tpu_custom_call.1} parent=0
    #allocation2 [shape = 'u8[4096]{0}', space=vmem, size = 0x1000, scoped, tag = 'output window, operand 0, single buffered']
    #allocation3 [shape = 's32[1]{0}', space=sflag, size = 0x4, scoped, tag = 'scoped memory for tpu_custom_call.1']
    %9 = vsyncpa [#allocation3], 0
    // Predicated region
    $region2: #{tpu_custom_call.1} parent=1 // pred_check
      _
    $region3: #{tpu_custom_call.1} parent=1 // pred_check_branch
      %11 = sbr.rel (0) target = $region5
    $region4: #{tpu_custom_call.1} parent=1 // pred_region
      _
    $region5: #{tpu_custom_call.1} parent=1 // pred_fallthru
      _
    // Predicated region
    $region6: #{tpu_custom_call.1} parent=1 // pred_check
      _
    $region7: #{tpu_custom_call.1} parent=1 // pred_check_branch
      %13 = sbr.rel (0) target = $region9
    $region8: #{tpu_custom_call.1} parent=1 // pred_region
      _
    $region9: #{tpu_custom_call.1} parent=1 // pred_fallthru
      _
    // Predicated region
    $region10: #{tpu_custom_call.1} parent=1 // pred_check
      _
    $region11: #{tpu_custom_call.1} parent=1 // pred_check_branch
      %15 = sbr.rel (0) target = $region13
    $region12: #{tpu_custom_call.1} parent=1 // pred_region
      _
    $region13: #{tpu_custom_call.1} parent=1 // pred_fallthru
      _
    // Predicated region
    $region14: #{tpu_custom_call.1} parent=1 // pred_check
      _
    $region15: #{tpu_custom_call.1} parent=1 // pred_check_branch
      %17 = sbr.rel (0) target = $region17
    $region16: #{tpu_custom_call.1} parent=1 // pred_region
      _
    $region17: #{tpu_custom_call.1} parent=1 // pred_fallthru
      _
    %v18 = vld [vmem:[%s3] sm:$0x3]
    %v19 = vld [vmem:[%s3 + $0x2] sm:$0x1]
    %v20 = vld [vmem:[%s0] sm:$0xff]
    %v21 = vld [vmem:[%s1] sm:$0xff]
    %v22 = vld [vmem:[%s1 + $0x8] sm:$0xff]
    %v23 = vld [vmem:[%s1 + $0x10] sm:$0xff]
    %v24 = vld [vmem:[%s1 + $0x18] sm:$0xff]
    %v25 = vld [vmem:[%s1 + $0x20] sm:$0xff]
    %v26 = vld [vmem:[%s1 + $0x28] sm:$0xff]
    %v27 = vld [vmem:[%s1 + $0x30] sm:$0xff]
    %v28 = vld [vmem:[%s1 + $0x38] sm:$0xff]
    %v29 = vld [vmem:[%s1 + $0x40] sm:$0xff]
    %v30 = vld [vmem:[%s1 + $0x48] sm:$0xff]
    %v31 = vld [vmem:[%s1 + $0x50] sm:$0xff]
    %v32 = vld [vmem:[%s1 + $0x58] sm:$0xff]
    %v33 = vld [vmem:[%s1 + $0x60] sm:$0xff]
    %v34 = vld [vmem:[%s1 + $0x68] sm:$0xff]
    %v36 = vlaneseq
    %v37 = vshrl.u32 %v36, 7
    %v38 = vsub.s32 0, %v37
    %v39 = vrot.slane %v18, %v38
    %v40 = vlaneseq
    %v41 = vshrl.u32 %v40, 7
    %v42 = vsub.s32 1, %v41
    %v43 = vrot.slane %v18, %v42
    %vm46 = vcmask 457728
    %v48 = vsel %vm46, %v20, 0
    %50 = vmatprep.subr.mxu0 0.0
    %51 = vmatpush1.msra.mxu0 0.0
    %52 = vmatprep.subr.mxu0 0.0
    %53 = vmatpush1.msra.mxu0 0.0
    %54 = vmatprep.subr.mxu0 0.0
    %55 = vmatpush1.msra.mxu0 0.0
    %56 = vmatprep.subr.mxu0 0.0
    %57 = vmatpush1.msra.mxu0 0.0
    %58 = vmatprep.subr.mxu0 0.0
    %59 = vmatpush1.msra.mxu0 0.0
    %60 = vmatprep.subr.mxu0 0.0
    %61 = vmatpush1.msra.mxu0 0.0
    %62 = vmatprep.subr.mxu0 0.0
    %63 = vmatpush1.msra.mxu0 0.0
    %64 = vmatprep.subr.mxu0 0.0
    %65 = vmatpush1.msra.mxu0 0.0
    %66 = vmatprep.subr.mxu0 0.0
    %67 = vmatpush1.msra.mxu0 0.0
    %68 = vmatprep.subr.mxu0 %v34
    %69 = vmatpush1.msra.mxu0 %v33
    %70 = vmatprep.subr.mxu0 %v32
    %71 = vmatpush1.msra.mxu0 %v31
    %72 = vmatprep.subr.mxu0 %v30
    %73 = vmatpush1.msra.mxu0 %v29
    %74 = vmatprep.subr.mxu0 %v28
    %75 = vmatpush1.msra.mxu0 %v27
    %76 = vmatprep.subr.mxu0 %v26
    %77 = vmatpush1.msra.mxu0 %v25
    %78 = vmatprep.subr.mxu0 %v24
    %79 = vmatpush1.msra.mxu0 %v23
    %80 = vmatprep.subr.mxu0 %v22
    %81 = vmatpush1.msra.mxu0 %v21
    %82 = vmatprep.subr.mxu0 0.0
    %83 = vmatpush2.msra.mxu0 0.0
    %84 = vmatprep.subr.mxu0 0.0
    %85 = vmatpush2.msra.mxu0 0.0
    %86 = vmatprep.subr.mxu0 0.0
    %87 = vmatpush2.msra.mxu0 0.0
    %88 = vmatprep.subr.mxu0 0.0
    %89 = vmatpush2.msra.mxu0 0.0
    %90 = vmatprep.subr.mxu0 0.0
    %91 = vmatpush2.msra.mxu0 0.0
    %92 = vmatprep.subr.mxu0 0.0
    %93 = vmatpush2.msra.mxu0 0.0
    %94 = vmatprep.subr.mxu0 0.0
    %95 = vmatpush2.msra.mxu0 0.0
    %96 = vmatprep.subr.mxu0 0.0
    %97 = vmatpush2.msra.mxu0 0.0
    %98 = vmatprep.subr.mxu0 0.0
    %99 = vmatpush2.msra.mxu0 0.0
    %100 = vmatprep.subr.mxu0 0.0
    %101 = vmatpush2.msra.mxu0 0.0
    %102 = vmatprep.subr.mxu0 0.0
    %103 = vmatpush2.msra.mxu0 0.0
    %104 = vmatprep.subr.mxu0 0.0
    %105 = vmatpush2.msra.mxu0 0.0
    %106 = vmatprep.subr.mxu0 0.0
    %107 = vmatpush2.msra.mxu0 0.0
    %108 = vmatprep.subr.mxu0 0.0
    %109 = vmatpush2.msra.mxu0 0.0
    %110 = vmatprep.subr.mxu0 0.0
    %111 = vmatpush2.msra.mxu0 0.0
    %112 = vmatprep.subr.mxu0 0.0
    %113 = vmatpush2.msra.mxu0 0.0
    %114 = vmatprep.mubr.f32.mxu0 0.0
    %115 = vmatmul.mubr.f32.gmra.mxu0 %v48
    %v116 = vpop.f32.mrf.mxu0
    %v117 = vadd.f32 %v39, %v116
    %v118 = vpop.f32.mrf.mxu0
    %v119 = vadd.f32 %v43, %v118
    %120 = vdwg.mxu0
    %v121 = vmax.f32 %v117, 0.0
    %v122 = vmax.f32 %v119, 0.0
    %v123 = vld [vmem:[%s2] sm:$0xff]
    %v124 = vld [vmem:[%s2 + $0x8] sm:$0xff]
    %v125 = vld [vmem:[%s2 + $0x10] sm:$0xff]
    %v126 = vld [vmem:[%s2 + $0x18] sm:$0xff]
    %v127 = vld [vmem:[%s2 + $0x20] sm:$0xff]
    %v128 = vld [vmem:[%s2 + $0x28] sm:$0xff]
    %v129 = vld [vmem:[%s2 + $0x30] sm:$0xff]
    %v130 = vld [vmem:[%s2 + $0x38] sm:$0xff]
    %v131 = vld [vmem:[%s2 + $0x40] sm:$0xff]
    %v132 = vld [vmem:[%s2 + $0x48] sm:$0xff]
    %v133 = vld [vmem:[%s2 + $0x50] sm:$0xff]
    %v134 = vld [vmem:[%s2 + $0x58] sm:$0xff]
    %v135 = vld [vmem:[%s2 + $0x60] sm:$0xff]
    %v136 = vld [vmem:[%s2 + $0x68] sm:$0xff]
    %v137 = vld [vmem:[%s2 + $0x70] sm:$0xff]
    %v138 = vld [vmem:[%s2 + $0x78] sm:$0xff]
    %v139 = vld [vmem:[%s2 + $0x80] sm:$0xff]
    %v140 = vld [vmem:[%s2 + $0x88] sm:$0xff]
    %v141 = vld [vmem:[%s2 + $0x90] sm:$0xff]
    %v142 = vld [vmem:[%s2 + $0x98] sm:$0xff]
    %v144 = vlaneseq
    %v145 = vshrl.u32 %v144, 7
    %v146 = vsub.s32 0, %v145
    %v147 = vrot.slane %v19, %v146
    %vm149 = vcmask 261120
    %v151 = vsel %vm149, %v122, 0
    %153 = vmatprep.subr.mxu0 0.0
    %154 = vmatpush1.msra.mxu0 %v138
    %155 = vmatprep.subr.mxu0 0.0
    %156 = vmatpush1.msra.mxu0 %v137
    %157 = vmatprep.subr.mxu0 0.0
    %158 = vmatpush1.msra.mxu0 %v136
    %159 = vmatprep.subr.mxu0 0.0
    %160 = vmatpush1.msra.mxu0 %v135
    %161 = vmatprep.subr.mxu0 0.0
    %162 = vmatpush1.msra.mxu0 %v134
    %163 = vmatprep.subr.mxu0 0.0
    %164 = vmatpush1.msra.mxu0 %v133
    %165 = vmatprep.subr.mxu0 0.0
    %166 = vmatpush1.msra.mxu0 %v132
    %167 = vmatprep.subr.mxu0 0.0
    %168 = vmatpush1.msra.mxu0 %v131
    %169 = vmatprep.subr.mxu0 0.0
    %170 = vmatpush1.msra.mxu0 %v130
    %171 = vmatprep.subr.mxu0 0.0
    %172 = vmatpush1.msra.mxu0 %v129
    %173 = vmatprep.subr.mxu0 0.0
    %174 = vmatpush1.msra.mxu0 %v128
    %175 = vmatprep.subr.mxu0 0.0
    %176 = vmatpush1.msra.mxu0 %v127
    %177 = vmatprep.subr.mxu0 0.0
    %178 = vmatpush1.msra.mxu0 %v126
    %179 = vmatprep.subr.mxu0 0.0
    %180 = vmatpush1.msra.mxu0 %v125
    %181 = vmatprep.subr.mxu0 0.0
    %182 = vmatpush1.msra.mxu0 %v124
    %183 = vmatprep.subr.mxu0 0.0
    %184 = vmatpush1.msra.mxu0 %v123
    %185 = vmatprep.subr.mxu0 0.0
    %186 = vmatpush2.msra.mxu0 0.0
    %187 = vmatprep.subr.mxu0 0.0
    %188 = vmatpush2.msra.mxu0 0.0
    %189 = vmatprep.subr.mxu0 0.0
    %190 = vmatpush2.msra.mxu0 0.0
    %191 = vmatprep.subr.mxu0 0.0
    %192 = vmatpush2.msra.mxu0 0.0
    %193 = vmatprep.subr.mxu0 0.0
    %194 = vmatpush2.msra.mxu0 0.0
    %195 = vmatprep.subr.mxu0 0.0
    %196 = vmatpush2.msra.mxu0 0.0
    %197 = vmatprep.subr.mxu0 0.0
    %198 = vmatpush2.msra.mxu0 0.0
    %199 = vmatprep.subr.mxu0 0.0
    %200 = vmatpush2.msra.mxu0 0.0
    %201 = vmatprep.subr.mxu0 0.0
    %202 = vmatpush2.msra.mxu0 0.0
    %203 = vmatprep.subr.mxu0 0.0
    %204 = vmatpush2.msra.mxu0 0.0
    %205 = vmatprep.subr.mxu0 0.0
    %206 = vmatpush2.msra.mxu0 0.0
    %207 = vmatprep.subr.mxu0 0.0
    %208 = vmatpush2.msra.mxu0 0.0
    %209 = vmatprep.subr.mxu0 0.0
    %210 = vmatpush2.msra.mxu0 %v142
    %211 = vmatprep.subr.mxu0 0.0
    %212 = vmatpush2.msra.mxu0 %v141
    %213 = vmatprep.subr.mxu0 0.0
    %214 = vmatpush2.msra.mxu0 %v140
    %215 = vmatprep.subr.mxu0 0.0
    %216 = vmatpush2.msra.mxu0 %v139
    %217 = vmatprep.mubr.f32.mxu0 %v151
    %218 = vmatmul.mubr.f32.gmra.mxu0 %v121
    %v219 = vpop.f32.mrf.mxu0
    %v220 = vadd.f32 %v147, %v219
    %v221 = vpop.f32.mrf.mxu0
    %222 = vdwg.mxu0
    %v223 = vxor.u32 %v220, 2147483648
    %v224 = vmul.f32 %v223, 1.442695
    %v225 = vpow.pop %v224
    %v226 = vadd.f32 %v225, 1.0
    %v227 = vrcp.pop %v226
    %v228 = vmul.f32 1.0, %v227
    %vm229 = vcmask 39936
    %230 = vst.msk [vmem:[#allocation2] sm:$0xff] %vm229, %v228
    // Predicated region
    $region18: #{tpu_custom_call.1} parent=1 // pred_check
      _
    $region19: #{tpu_custom_call.1} parent=1 // pred_check_branch
      %232 = sbr.rel (0) target = $region21
    $region20: #{tpu_custom_call.1} parent=1 // pred_region
      %s234 = ssub.s32 128, 128
      %235 = vsyncadd [#allocation3], %s234
      %s237 = sshll.u32 [#allocation2], 4
      %s238 = int_to_ptr.vmem [resolvable:$true] %s237
      %240 = dma.vmem_to_hbm [thread:$0]  %s238, 128, %s4, [#allocation3]
    $region21: #{tpu_custom_call.1} parent=1 // pred_fallthru
      _
    // Predicated region
    $region22: #{tpu_custom_call.1} parent=1 // pred_check
      _
    $region23: #{tpu_custom_call.1} parent=1 // pred_check_branch
      %242 = sbr.rel (0) target = $region25
    $region24: #{tpu_custom_call.1} parent=1 // pred_region
      %243 = dma.done [#allocation3], 128
    $region25: #{tpu_custom_call.1} parent=1 // pred_fallthru
      _
    %244 = vsyncpa [#allocation3], 1

</llo_original>
